<compile_context>
chip_gen: v7x
topology: tpu7x:2x2x1
jax: 0.10.0
libtpu: 0.0.40
codegen_flags: <defaults>
</compile_context>

<pallas_src>
import jax
import jax.numpy as jnp
from jax.experimental import pallas as pl
from jax.experimental.pallas import tpu as pltpu


def sgu_kernel(u_ref, v_ref, gamma_ref, beta_ref, w_ref, pb_ref, o_ref,
               vnorm_ref):
    # u_ref:     (TN, D)  seq-tile of the gating half (x dtype)
    # v_ref:     (N,  D)  full gated half for this batch (x dtype), resident
    # gamma_ref: (1,  D)  LayerNorm weight
    # beta_ref:  (1,  D)  LayerNorm bias
    # w_ref:     (N,  N)  full spatial projection weight (bf16), resident
    # pb_ref:    (N,  1)  projection bias (f32), resident
    # o_ref:     (TN, D)  output tile
    # vnorm_ref: (N,  D)  persistent VMEM scratch: LayerNorm(v) in bf16
    TN = u_ref.shape[0]
    N = vnorm_ref.shape[0]
    num_chunks = N // TN
    n = pl.program_id(1)

    # LayerNorm over the feature axis, computed once per batch (first
    # seq-tile) in TN-row chunks straight into the persistent scratch.
    # Two-pass variance (matches nn.LayerNorm more closely than m2 - m1^2).
    @pl.when(n == 0)
    def _():
        gamma = gamma_ref[...].astype(jnp.float32)
        beta = beta_ref[...].astype(jnp.float32)

        @pl.loop(0, num_chunks)
        def _(c):
            s = pl.multiple_of(c * TN, TN)
            v = v_ref[pl.ds(s, TN), :].astype(jnp.float32)
            m = jnp.mean(v, axis=-1, keepdims=True)
            d = v - m
            var = jnp.mean(d * d, axis=-1, keepdims=True)
            vn = d * (jax.lax.rsqrt(var + 1e-5) * gamma) + beta
            vnorm_ref[pl.ds(s, TN), :] = vn.astype(vnorm_ref.dtype)

    # Spatial projection along the sequence axis (bf16 MXU, f32 accumulate):
    #   proj[n, d] = sum_m W[n, m] * v_norm[m, d] + b[n]
    # W rows are sliced from the resident full-weight block.
    n_start = pl.multiple_of(n * TN, TN)
    proj = jnp.dot(w_ref[pl.ds(n_start, TN), :], vnorm_ref[...],
                   preferred_element_type=jnp.float32)
    proj = proj + pb_ref[pl.ds(n_start, TN), :]

    # Gating. Multiply in f32, single cast at the store.
    # TODO(synk): dropout omitted (p=0.0 / eval mode -> identity).
    o_ref[...] = (u_ref[...].astype(jnp.float32) * proj).astype(o_ref.dtype)


def _pick_seq_tile(n):
    # Large tiles amortize the ~0.35 us per-grid-step overhead; 512 works on
    # v5e/v6e, and is still fine on v7x now that v/W are single-buffered.
    for t in (512, 256, 128, 64, 32, 16, 8):
        if n % t == 0:
            return t
    return n


def _vmem_limit_bytes():
    # Generation-aware scoped-VMEM limit: ~80% of physical per-core VMEM
    # (v5e/v6e: ~102 MiB of 128; v7x: ~51 MiB of 64) so double buffers and
    # compiler-internal scratch keep headroom. Falls back to the compiler
    # default if the hardware query is unavailable.
    try:
        cap = pltpu.get_tpu_info().vmem_capacity_bytes
        return int(cap * 4 // 5)
    except Exception:
        return None


def spatial_gating_unit(x, gamma, beta, w_proj, b_proj, *, seq_tile=None):
    """x: (B, N, d_ffn). Returns (B, N, d_ffn // 2)."""
    B, N, d_ffn = x.shape
    assert d_ffn % 2 == 0
    D = d_ffn // 2
    # The u/v split via the last-axis *block index* of x uses a (.., D) block
    # on a (.., 2D) array, so D must be lane-aligned.
    assert D % 128 == 0, "d_ffn // 2 must be a multiple of 128"
    TN = seq_tile if seq_tile is not None else _pick_seq_tile(N)
    assert N % TN == 0 and (TN % 8 == 0 or TN == N)

    gamma2 = gamma.reshape(1, D)
    beta2 = beta.reshape(1, D)
    # NOTE: in a real model cast the weight to bf16 once at parameter init;
    # this astype is skipped when w_proj is already bf16 (and constant-folds
    # when the wrapper is jitted with the weight as a constant).
    w_bf16 = w_proj if w_proj.dtype == jnp.bfloat16 else w_proj.astype(jnp.bfloat16)
    pb2 = b_proj.reshape(N, 1).astype(jnp.float32)

    resident = pl.Buffered(1)  # block index never changes -> no double buffer

    return pl.pallas_call(
        sgu_kernel,
        out_shape=jax.ShapeDtypeStruct((B, N, D), x.dtype),
        grid_spec=pltpu.PrefetchScalarGridSpec(
            num_scalar_prefetch=0,
            grid=(B, N // TN),
            in_specs=[
                # u half: seq-tile, last-axis block 0 of x (no wrapper slicing).
                pl.BlockSpec((None, TN, D), lambda b, n: (b, n, 0)),
                # v half: full (N, D), last-axis block 1 of x; index constant
                # within a batch so it is DMA'd once per batch. Single-buffered
                # to halve its VMEM footprint (matters on v7x's 64 MiB).
                pl.BlockSpec((None, N, D), lambda b, n: (b, 0, 1),
                             pipeline_mode=resident),
                pl.BlockSpec((1, D), lambda b, n: (0, 0)),     # LN gamma
                pl.BlockSpec((1, D), lambda b, n: (0, 0)),     # LN beta
                # Full spatial-projection weight, resident across the whole
                # grid: DMA'd from HBM exactly once per core instead of once
                # per (batch, seq-tile).
                pl.BlockSpec((N, N), lambda b, n: (0, 0),
                             pipeline_mode=resident),
                # Projection bias, resident (N, 1): its (lane-padded) DMA now
                # happens once total rather than once per grid step.
                pl.BlockSpec((N, 1), lambda b, n: (0, 0),
                             pipeline_mode=resident),
            ],
            out_specs=pl.BlockSpec((None, TN, D), lambda b, n: (b, n, 0)),
            scratch_shapes=[pltpu.VMEM((N, D), jnp.bfloat16)],  # LayerNorm(v)
        ),
        compiler_params=pltpu.CompilerParams(
            dimension_semantics=("parallel", "arbitrary"),
            vmem_limit_bytes=_vmem_limit_bytes(),
        ),
    )(x, x, gamma2, beta2, w_bf16, pb2)


def reference(x, gamma, beta, w_proj, b_proj):
    D = x.shape[-1] // 2
    u, v = x[..., :D], x[..., D:]
    mean = jnp.mean(v, axis=-1, keepdims=True)
    var = jnp.mean((v - mean) ** 2, axis=-1, keepdims=True)
    vn = (v - mean) / jnp.sqrt(var + 1e-5) * gamma + beta
    # permute(0,2,1) -> Linear(seq) -> permute back  ==  einsum over seq axis
    v_out = jnp.einsum("nm,bmd->bnd", w_proj, vn) + b_proj[None, :, None]
    return u * v_out


if __name__ == "__main__":
    key = jax.random.PRNGKey(0)
    # Small but lane-aligned shapes: D = d_ffn // 2 = 128 keeps the output
    # lane dim dense; seq_len = 8 keeps the (N, N) spatial matmul tiny.
    B, seq_len, d_ffn = 2, 8, 256
    D = d_ffn // 2

    kx, kw = jax.random.split(key)
    x = jax.random.normal(kx, (B, seq_len, d_ffn), dtype=jnp.float32)

    # Deterministic parameter init matching the module's __init__:
    gamma = jnp.ones((D,), jnp.float32)          # LayerNorm weight
    beta = jnp.zeros((D,), jnp.float32)          # LayerNorm bias
    w_proj = 0.02 * jax.random.normal(kw, (seq_len, seq_len), dtype=jnp.float32)
    b_proj = jnp.ones((seq_len,), jnp.float32)   # proj.bias.data.fill_(1.0)

    out = spatial_gating_unit(x, gamma, beta, w_proj, b_proj)
    out = jax.block_until_ready(out)

    ref = reference(x, gamma, beta, w_proj, b_proj)
    assert out.shape == (B, seq_len, D)
    # Tolerance loosened vs an f32-only version: W / v_norm run in bf16 on the
    # MXU (accumulation stays f32 via preferred_element_type).
    assert jnp.allclose(out, ref, atol=2e-2, rtol=2e-2), float(
        jnp.max(jnp.abs(out - ref)))
    print("KERNEL_OK")
</pallas_src>

<mosaic_0001>
module attributes {stable_mosaic.version = 11 : i64} {
  func.func @sgu_kernel(%arg0: i32, %arg1: i32, %arg2: memref<1x8x128xf32, #tpu.memory_space<vmem>>, %arg3: memref<1x8x128xf32, #tpu.memory_space<vmem>>, %arg4: memref<1x128xf32, #tpu.memory_space<vmem>>, %arg5: memref<1x128xf32, #tpu.memory_space<vmem>>, %arg6: memref<8x8xbf16, #tpu.memory_space<vmem>>, %arg7: memref<8x1xf32, #tpu.memory_space<vmem>>, %arg8: memref<1x8x128xf32, #tpu.memory_space<vmem>>, %arg9: memref<8x128xbf16, #tpu.memory_space<vmem>>) attributes {dimension_semantics = [#tpu.dimension_semantics<parallel>, #tpu.dimension_semantics<arbitrary>], iteration_bounds = array<i64: 2, 1>, scalar_prefetch = 0 : i64, scratch_operands = 1 : i64, tpu.core_type = #tpu.core_type<tc>, window_params = [{transform_indices = @transform_0, window_bounds = array<i64: 1, 8, 128>}, {pipeline_mode = #tpu.pipeline_mode<synchronous>, transform_indices = @transform_1, window_bounds = array<i64: 1, 8, 128>}, {pipeline_mode = #tpu.pipeline_mode<synchronous>, transform_indices = @transform_2, window_bounds = array<i64: 1, 128>}, {pipeline_mode = #tpu.pipeline_mode<synchronous>, transform_indices = @transform_3, window_bounds = array<i64: 1, 128>}, {pipeline_mode = #tpu.pipeline_mode<synchronous>, transform_indices = @transform_4, window_bounds = array<i64: 8, 8>}, {pipeline_mode = #tpu.pipeline_mode<synchronous>, transform_indices = @transform_5, window_bounds = array<i64: 8, 1>}, {transform_indices = @transform_6, window_bounds = array<i64: 1, 8, 128>}]} {
    %c0_i32 = arith.constant 0 : i32
    %0 = arith.cmpi eq, %arg1, %c0_i32 : i32
    %1 = arith.extui %0 : i1 to i32
    %c0_i32_0 = arith.constant 0 : i32
    %2 = arith.cmpi ne, %1, %c0_i32_0 : i32
    scf.if %2 {
      %c0_10 = arith.constant 0 : index
      %c0_11 = arith.constant 0 : index
      %19 = vector.load %arg4[%c0_10, %c0_11] : memref<1x128xf32, #tpu.memory_space<vmem>>, vector<1x128xf32>
      %c0_12 = arith.constant 0 : index
      %c0_13 = arith.constant 0 : index
      %20 = vector.load %arg5[%c0_12, %c0_13] : memref<1x128xf32, #tpu.memory_space<vmem>>, vector<1x128xf32>
      %c0_i32_14 = arith.constant 0 : i32
      %c1_i32 = arith.constant 1 : i32
      %21 = arith.muli %c0_i32_14, %c1_i32 : i32
      %c0_i32_15 = arith.constant 0 : i32
      %22 = arith.addi %c0_i32_15, %21 : i32
      %c8_i32_16 = arith.constant 8 : i32
      %23 = arith.muli %22, %c8_i32_16 : i32
      %24 = tpu.assume_multiple %23, 8 : i32
      %c0_17 = arith.constant 0 : index
      %25 = arith.index_cast %24 : i32 to index
      %c0_18 = arith.constant 0 : index
      %26 = vector.load %arg3[%c0_17, %25, %c0_18] : memref<1x8x128xf32, #tpu.memory_space<vmem>>, vector<1x8x128xf32>
      %27 = vector.shape_cast %26 : vector<1x8x128xf32> to vector<8x128xf32>
      %cst_19 = arith.constant dense<0.000000e+00> : vector<8xf32>
      %28 = vector.multi_reduction <add>, %27, %cst_19 [1] : vector<8x128xf32> to vector<8xf32>
      %29 = vector.shape_cast %28 : vector<8xf32> to vector<8x1xf32>
      %cst_20 = arith.constant 1.280000e+02 : f32
      %30 = vector.broadcast %cst_20 : f32 to vector<8x1xf32>
      %31 = arith.divf %29, %30 : vector<8x1xf32>
      %32 = vector.broadcast %31 : vector<8x1xf32> to vector<8x128xf32>
      %33 = arith.subf %27, %32 : vector<8x128xf32>
      %34 = arith.mulf %33, %33 : vector<8x128xf32>
      %cst_21 = arith.constant dense<0.000000e+00> : vector<8xf32>
      %35 = vector.multi_reduction <add>, %34, %cst_21 [1] : vector<8x128xf32> to vector<8xf32>
      %36 = vector.shape_cast %35 : vector<8xf32> to vector<8x1xf32>
      %cst_22 = arith.constant 1.280000e+02 : f32
      %37 = vector.broadcast %cst_22 : f32 to vector<8x1xf32>
      %38 = arith.divf %36, %37 : vector<8x1xf32>
      %cst_23 = arith.constant 9.99999974E-6 : f32
      %39 = vector.broadcast %cst_23 : f32 to vector<8x1xf32>
      %40 = arith.addf %38, %39 : vector<8x1xf32>
      %41 = math.rsqrt %40 : vector<8x1xf32>
      %42 = vector.broadcast %41 : vector<8x1xf32> to vector<8x128xf32>
      %43 = vector.broadcast %19 : vector<1x128xf32> to vector<8x128xf32>
      %44 = arith.mulf %42, %43 : vector<8x128xf32>
      %45 = arith.mulf %33, %44 : vector<8x128xf32>
      %46 = vector.broadcast %20 : vector<1x128xf32> to vector<8x128xf32>
      %47 = arith.addf %45, %46 : vector<8x128xf32>
      %48 = arith.truncf %47 : vector<8x128xf32> to vector<8x128xbf16>
      %49 = arith.index_cast %24 : i32 to index
      %c0_24 = arith.constant 0 : index
      %50 = vector.load %arg9[%49, %c0_24] : memref<8x128xbf16, #tpu.memory_space<vmem>>, vector<8x128xbf16>
      tpu.vector_store %arg9[%49, %c0_24], %48 {strides = array<i32>} : memref<8x128xbf16, #tpu.memory_space<vmem>>, vector<8x128xbf16>,
      %c1_i32_25 = arith.constant 1 : i32
    } else {
    }
    %c8_i32 = arith.constant 8 : i32
    %3 = arith.muli %arg1, %c8_i32 : i32
    %4 = tpu.assume_multiple %3, 8 : i32
    %5 = arith.index_cast %4 : i32 to index
    %c0 = arith.constant 0 : index
    %6 = vector.load %arg6[%5, %c0] : memref<8x8xbf16, #tpu.memory_space<vmem>>, vector<8x8xbf16>
    %c0_1 = arith.constant 0 : index
    %c0_2 = arith.constant 0 : index
    %7 = vector.load %arg9[%c0_1, %c0_2] : memref<8x128xbf16, #tpu.memory_space<vmem>>, vector<8x128xbf16>
    %cst = arith.constant dense<0.000000e+00> : vector<8x128xf32>
    %8 = tpu.matmul %6, %7, %cst {dimension_numbers = #tpu.dot_dimension_numbers<[1], [0], [0], [1], [0, 0, 1, 1], [], []>} : vector<8x8xbf16>, vector<8x128xbf16>, vector<8x128xf32> -> vector<8x128xf32>
    %9 = arith.index_cast %4 : i32 to index
    %c0_3 = arith.constant 0 : index
    %10 = vector.load %arg7[%9, %c0_3] : memref<8x1xf32, #tpu.memory_space<vmem>>, vector<8x1xf32>
    %11 = vector.broadcast %10 : vector<8x1xf32> to vector<8x128xf32>
    %12 = arith.addf %8, %11 : vector<8x128xf32>
    %c0_4 = arith.constant 0 : index
    %c0_5 = arith.constant 0 : index
    %c0_6 = arith.constant 0 : index
    %13 = vector.load %arg2[%c0_4, %c0_5, %c0_6] : memref<1x8x128xf32, #tpu.memory_space<vmem>>, vector<1x8x128xf32>
    %14 = vector.shape_cast %13 : vector<1x8x128xf32> to vector<8x128xf32>
    %15 = arith.mulf %14, %12 : vector<8x128xf32>
    %c0_7 = arith.constant 0 : index
    %c0_8 = arith.constant 0 : index
    %c0_9 = arith.constant 0 : index
    %16 = vector.load %arg8[%c0_7, %c0_8, %c0_9] : memref<1x8x128xf32, #tpu.memory_space<vmem>>, vector<1x8x128xf32>
    %17 = vector.shape_cast %16 : vector<1x8x128xf32> to vector<8x128xf32>
    %18 = vector.shape_cast %15 : vector<8x128xf32> to vector<1x8x128xf32>
    tpu.vector_store %arg8[%c0_7, %c0_8, %c0_9], %18 {strides = array<i32>} : memref<1x8x128xf32, #tpu.memory_space<vmem>>, vector<1x8x128xf32>,
    return
  }
  func.func @transform_0(%arg0: i32, %arg1: i32) -> (i32, i32, i32) {
    %c0_i32 = arith.constant 0 : i32
    %c0_i32_0 = arith.constant 0 : i32
    return %arg0, %arg1, %c0_i32 : i32, i32, i32
  }
  func.func @transform_1(%arg0: i32, %arg1: i32) -> (i32, i32, i32) {
    %c0_i32 = arith.constant 0 : i32
    %c1_i32 = arith.constant 1 : i32
    %c0_i32_0 = arith.constant 0 : i32
    return %arg0, %c0_i32, %c1_i32 : i32, i32, i32
  }
  func.func @transform_2(%arg0: i32, %arg1: i32) -> (i32, i32) {
    %c0_i32 = arith.constant 0 : i32
    %c0_i32_0 = arith.constant 0 : i32
    %c0_i32_1 = arith.constant 0 : i32
    return %c0_i32, %c0_i32_0 : i32, i32
  }
  func.func @transform_3(%arg0: i32, %arg1: i32) -> (i32, i32) {
    %c0_i32 = arith.constant 0 : i32
    %c0_i32_0 = arith.constant 0 : i32
    %c0_i32_1 = arith.constant 0 : i32
    return %c0_i32, %c0_i32_0 : i32, i32
  }
  func.func @transform_4(%arg0: i32, %arg1: i32) -> (i32, i32) {
    %c0_i32 = arith.constant 0 : i32
    %c0_i32_0 = arith.constant 0 : i32
    %c0_i32_1 = arith.constant 0 : i32
    return %c0_i32, %c0_i32_0 : i32, i32
  }
  func.func @transform_5(%arg0: i32, %arg1: i32) -> (i32, i32) {
    %c0_i32 = arith.constant 0 : i32
    %c0_i32_0 = arith.constant 0 : i32
    %c0_i32_1 = arith.constant 0 : i32
    return %c0_i32, %c0_i32_0 : i32, i32
  }
  func.func @transform_6(%arg0: i32, %arg1: i32) -> (i32, i32, i32) {
    %c0_i32 = arith.constant 0 : i32
    %c0_i32_0 = arith.constant 0 : i32
    return %arg0, %arg1, %c0_i32 : i32, i32, i32
  }
}

</mosaic_0001>

<llo_original>
// kernel: tpu_custom_call.1
$region0: #{tpu_custom_call.1}
  #allocation0 [shape = 'u32[]', space=smem, size = 0x4, offset = 0x4, fixed_abs, tag = 'smem constant byte address 0x4 - core index']
  #allocation1 [shape = 'u32[144,128]{1,0:T(1,128)}', space=vmem, size = 0x12000, scoped, tag = 'internal scratch']
  #allocation2 [shape = 'bf16[8,128]{1,0:T(8,128)(2,1)}', space=vmem, size = 0x800, scoped, tag = 'scratch operand']
  %s0 = inlined_call_operand.hbm [shape: f32[2,8,256], index: 0, kind: input, shape index: {}]
  %s1 = inlined_call_operand.hbm [shape: f32[2,8,256], index: 1, kind: input, shape index: {}]
  %s2 = inlined_call_operand.vmem [shape: f32[1,128], index: 2, kind: input, shape index: {}]
  %s3 = inlined_call_operand.vmem [shape: f32[1,128], index: 3, kind: input, shape index: {}]
  %s4 = inlined_call_operand.vmem [shape: bf16[8,8], index: 4, kind: input, shape index: {}]
  %s5 = inlined_call_operand.vmem [shape: f32[8,1], index: 5, kind: input, shape index: {}]
  %s6 = inlined_call_operand.hbm [shape: f32[2,8,128], index: 6, kind: output, shape index: {}]
  %s7 = sld [smem:[#allocation0]]
  $region69: #{tpu_custom_call.1} parent=0
    _
  %s9 = ssub.s32 1, %s7
  %s10 = scalar_select 0, %s9, %s7
  $region1: #{tpu_custom_call.1} parent=0
    #allocation3 [shape = 'u8[8192]{0}', space=vmem, size = 0x2000, scoped, tag = 'input window, operand 0']
    #allocation4 [shape = 's32[2]{0}', space=sflag, size = 0x8, scoped, tag = 'scoped memory for tpu_custom_call.1']
    #allocation5 [shape = 's32[2]{0}', space=sflag, size = 0x8, scoped, tag = 'scoped memory for tpu_custom_call.1']
    #allocation6 [shape = 'u8[4096]{0}', space=vmem, size = 0x1000, scoped, tag = 'input window, operand 1, single buffered']
    #allocation7 [shape = 's32[1]{0}', space=sflag, size = 0x4, scoped, tag = 'scoped memory for tpu_custom_call.1']
    #allocation8 [shape = 'u8[8192]{0}', space=vmem, size = 0x2000, scoped, tag = 'output window, operand 0']
    %11 = vsyncpa [#allocation4], 0
    %s12 = scalar_lea.sflag [#allocation4], 1
    %13 = vsyncpa %s12, 0
    %14 = vsyncpa [#allocation7], 0
    %15 = vsyncpa [#allocation5], 0
    %s16 = scalar_lea.sflag [#allocation5], 1
    %17 = vsyncpa %s16, 0
    loop: start=0, step=1, limit=4
    $region2: #{tpu_custom_call.1} parent=1 // loop_pre_header
      _
    $region3: #{tpu_custom_call.1} parent=1 // loop_header
      %s19 = sphi 0, %s23
      %p20 = scmp.ge.s32.totalorder %s19, 4
      %s26 = sphi 0, %s38
      %s27 = sphi 0, %s34
      %s28 = sphi 0, %s26
      %s29 = sphi 0, %s27
      %s30 = sphi 0, %s28
      %s31 = sphi 0, %s29
      %s43 = sphi 0, %s45
      %s46 = sphi 0, %s43
      %s47 = sphi 0, %s46
      %s63 = sphi 0, %s47
      %s69 = sphi 0, %s71
      %s72 = sphi 0, %s69
      %s73 = sphi 0, %s72
      %s89 = sphi 0, %s73
      %s93 = sphi 0, %s93
      %s95 = sphi 0, %s93
      %s96 = sphi 0, %s95
      %s110 = sphi 0, %s96
      %s114 = sphi 0, %s114
      %s116 = sphi 0, %s114
      %s117 = sphi 0, %s116
      %s131 = sphi 0, %s117
      %s135 = sphi 0, %s135
      %s137 = sphi 0, %s135
      %s138 = sphi 0, %s137
      %s152 = sphi 0, %s138
      %s156 = sphi 0, %s156
      %s158 = sphi 0, %s156
      %s159 = sphi 0, %s158
      %s173 = sphi 0, %s159
      %s181 = sphi 0, %s183
      %s184 = sphi 0, %s181
      %s185 = sphi 0, %s184
      %s201 = sphi 0, %s185
    $region4: #{tpu_custom_call.1} parent=1 // loop_header_branch
      %22 = sbr.rel (%p20) target = $region8
    $region5: #{tpu_custom_call.1} parent=1 // loop_body
      %s24 = ssub.s32 %s19, 1
      %s25 = ssub.s32 %s19, 2
      %s32 = sadd.s32 1, %s27
      %p33 = scmp.ge.s32.totalorder %s32, 1
      %s34 = scalar_select %p33, 0, %s32
      %s35 = sadd.s32 1, %s26
      %s36 = scalar_select %p33, %s35, %s26
      %p37 = scmp.ge.s32.totalorder %s36, 2
      %s38 = scalar_select %p37, 0, %s36
      %s39 = ssub.s32 %s26, %s38
      %s40 = ssub.s32 %s27, %s34
      %s41 = sor.u32 %s39, %s40
      %p42 = scmp.eq.s32.totalorder %s41, 0
      %s44 = sadd.s32 %s43, 1
      %s45 = scalar_select %p42, %s43, %s44
      %p48 = pneg %p42
      %p49 = scmp.eq.s32.totalorder %s19, 1
      %p50 = por %p48, %p49
      %p51 = scmp.ne.s32.totalorder %s43, %s46
      %p52 = scmp.eq.s32.totalorder %s19, 0
      %p53 = por %p51, %p52
      %p54 = scmp.ne.s32.totalorder %s43, %s46
      %p55 = scmp.eq.s32.totalorder %s24, 1
      %p56 = por %p54, %p55
      %p57 = scmp.ne.s32.totalorder %s46, %s47
      %p58 = scmp.eq.s32.totalorder %s24, 0
      %p59 = por %p57, %p58
      %p60 = scmp.ne.s32.totalorder %s46, %s47
      %p61 = scmp.eq.s32.totalorder %s25, 1
      %p62 = por %p60, %p61
      %p64 = scmp.ne.s32.totalorder %s47, %s63
      %p65 = scmp.eq.s32.totalorder %s25, 0
      %p66 = por %p64, %p65
      %s67 = ssub.s32 %s26, %s38
      %p68 = scmp.eq.s32.totalorder %s67, 0
      %s70 = sadd.s32 %s69, 1
      %s71 = scalar_select %p68, %s69, %s70
      %p74 = pneg %p68
      %p75 = scmp.eq.s32.totalorder %s19, 1
      %p76 = por %p74, %p75
      %p77 = scmp.ne.s32.totalorder %s69, %s72
      %p78 = scmp.eq.s32.totalorder %s19, 0
      %p79 = por %p77, %p78
      %p80 = scmp.ne.s32.totalorder %s69, %s72
      %p81 = scmp.eq.s32.totalorder %s24, 1
      %p82 = por %p80, %p81
      %p83 = scmp.ne.s32.totalorder %s72, %s73
      %p84 = scmp.eq.s32.totalorder %s24, 0
      %p85 = por %p83, %p84
      %p86 = scmp.ne.s32.totalorder %s72, %s73
      %p87 = scmp.eq.s32.totalorder %s25, 1
      %p88 = por %p86, %p87
      %p90 = scmp.ne.s32.totalorder %s73, %s89
      %p91 = scmp.eq.s32.totalorder %s25, 0
      %p92 = por %p90, %p91
      %s94 = sadd.s32 %s93, 1
      %p97 = scmp.eq.s32.totalorder %s19, 1
      %p98 = scmp.ne.s32.totalorder %s93, %s95
      %p99 = scmp.eq.s32.totalorder %s19, 0
      %p100 = por %p98, %p99
      %p101 = scmp.ne.s32.totalorder %s93, %s95
      %p102 = scmp.eq.s32.totalorder %s24, 1
      %p103 = por %p101, %p102
      %p104 = scmp.ne.s32.totalorder %s95, %s96
      %p105 = scmp.eq.s32.totalorder %s24, 0
      %p106 = por %p104, %p105
      %p107 = scmp.ne.s32.totalorder %s95, %s96
      %p108 = scmp.eq.s32.totalorder %s25, 1
      %p109 = por %p107, %p108
      %p111 = scmp.ne.s32.totalorder %s96, %s110
      %p112 = scmp.eq.s32.totalorder %s25, 0
      %p113 = por %p111, %p112
      %s115 = sadd.s32 %s114, 1
      %p118 = scmp.eq.s32.totalorder %s19, 1
      %p119 = scmp.ne.s32.totalorder %s114, %s116
      %p120 = scmp.eq.s32.totalorder %s19, 0
      %p121 = por %p119, %p120
      %p122 = scmp.ne.s32.totalorder %s114, %s116
      %p123 = scmp.eq.s32.totalorder %s24, 1
      %p124 = por %p122, %p123
      %p125 = scmp.ne.s32.totalorder %s116, %s117
      %p126 = scmp.eq.s32.totalorder %s24, 0
      %p127 = por %p125, %p126
      %p128 = scmp.ne.s32.totalorder %s116, %s117
      %p129 = scmp.eq.s32.totalorder %s25, 1
      %p130 = por %p128, %p129
      %p132 = scmp.ne.s32.totalorder %s117, %s131
      %p133 = scmp.eq.s32.totalorder %s25, 0
      %p134 = por %p132, %p133
      %s136 = sadd.s32 %s135, 1
      %p139 = scmp.eq.s32.totalorder %s19, 1
      %p140 = scmp.ne.s32.totalorder %s135, %s137
      %p141 = scmp.eq.s32.totalorder %s19, 0
      %p142 = por %p140, %p141
      %p143 = scmp.ne.s32.totalorder %s135, %s137
      %p144 = scmp.eq.s32.totalorder %s24, 1
      %p145 = por %p143, %p144
      %p146 = scmp.ne.s32.totalorder %s137, %s138
      %p147 = scmp.eq.s32.totalorder %s24, 0
      %p148 = por %p146, %p147
      %p149 = scmp.ne.s32.totalorder %s137, %s138
      %p150 = scmp.eq.s32.totalorder %s25, 1
      %p151 = por %p149, %p150
      %p153 = scmp.ne.s32.totalorder %s138, %s152
      %p154 = scmp.eq.s32.totalorder %s25, 0
      %p155 = por %p153, %p154
      %s157 = sadd.s32 %s156, 1
      %p160 = scmp.eq.s32.totalorder %s19, 1
      %p161 = scmp.ne.s32.totalorder %s156, %s158
      %p162 = scmp.eq.s32.totalorder %s19, 0
      %p163 = por %p161, %p162
      %p164 = scmp.ne.s32.totalorder %s156, %s158
      %p165 = scmp.eq.s32.totalorder %s24, 1
      %p166 = por %p164, %p165
      %p167 = scmp.ne.s32.totalorder %s158, %s159
      %p168 = scmp.eq.s32.totalorder %s24, 0
      %p169 = por %p167, %p168
      %p170 = scmp.ne.s32.totalorder %s158, %s159
      %p171 = scmp.eq.s32.totalorder %s25, 1
      %p172 = por %p170, %p171
      %p174 = scmp.ne.s32.totalorder %s159, %s173
      %p175 = scmp.eq.s32.totalorder %s25, 0
      %p176 = por %p174, %p175
      %s177 = ssub.s32 %s26, %s38
      %s178 = ssub.s32 %s27, %s34
      %s179 = sor.u32 %s177, %s178
      %p180 = scmp.eq.s32.totalorder %s179, 0
      %s182 = sadd.s32 %s181, 1
      %s183 = scalar_select %p180, %s181, %s182
      %p186 = pneg %p180
      %p187 = scmp.eq.s32.totalorder %s19, 1
      %p188 = por %p186, %p187
      %p189 = scmp.ne.s32.totalorder %s181, %s184
      %p190 = scmp.eq.s32.totalorder %s19, 0
      %p191 = por %p189, %p190
      %p192 = scmp.ne.s32.totalorder %s181, %s184
      %p193 = scmp.eq.s32.totalorder %s24, 1
      %p194 = por %p192, %p193
      %p195 = scmp.ne.s32.totalorder %s184, %s185
      %p196 = scmp.eq.s32.totalorder %s24, 0
      %p197 = por %p195, %p196
      %p198 = scmp.ne.s32.totalorder %s184, %s185
      %p199 = scmp.eq.s32.totalorder %s25, 1
      %p200 = por %p198, %p199
      %p202 = scmp.ne.s32.totalorder %s185, %s201
      %p203 = scmp.eq.s32.totalorder %s25, 0
      %p204 = por %p202, %p203
      %p205 = scmp.le.s32.totalorder 1, %s19
      %p206 = scmp.lt.s32.totalorder %s19, 3
      %p207 = pnand %p205, %p206
      %p208 = pneg %p207
      // Predicated region
      $region9: #{tpu_custom_call.1} parent=5 // pred_check
        _
      $region10: #{tpu_custom_call.1} parent=5 // pred_check_branch
        %210 = sbr.rel (%p207) target = $region12
      $region11: #{tpu_custom_call.1} parent=5 // pred_region
        %s211 = ssub.s32 %s19, 1
        // Predicated region
        $region13: #{tpu_custom_call.1} parent=11 // pred_check
          %p212 = pneg %p85
        $region14: #{tpu_custom_call.1} parent=11 // pred_check_branch
          %214 = sbr.rel (%p212) target = $region16
        $region15: #{tpu_custom_call.1} parent=11 // pred_region
          %s216 = ssub.s32 128, 128
          %217 = vsyncadd [#allocation7], %s216
          %s218 = smul.addr %s28, 2
          %s219 = sadd.s32 1, %s218
          %s220 = smul.addr %s219, 128
          %s221 = scalar_lea.hbm %s1, %s220
          %s223 = sshll.u32 [#allocation6], 4
          %s224 = int_to_ptr.vmem [resolvable:$true] %s223
          %226 = dma.hbm_to_vmem [thread:$0]  %s221, 128, %s224, [#allocation7]
        $region16: #{tpu_custom_call.1} parent=11 // pred_fallthru
          _
        // Predicated region
        $region17: #{tpu_custom_call.1} parent=11 // pred_check
          %p227 = pneg %p106
        $region18: #{tpu_custom_call.1} parent=11 // pred_check_branch
          %229 = sbr.rel (%p227) target = $region20
        $region19: #{tpu_custom_call.1} parent=11 // pred_region
          _
        $region20: #{tpu_custom_call.1} parent=11 // pred_fallthru
          _
        // Predicated region
        $region21: #{tpu_custom_call.1} parent=11 // pred_check
          %p230 = pneg %p127
        $region22: #{tpu_custom_call.1} parent=11 // pred_check_branch
          %232 = sbr.rel (%p230) target = $region24
        $region23: #{tpu_custom_call.1} parent=11 // pred_region
          _
        $region24: #{tpu_custom_call.1} parent=11 // pred_fallthru
          _
        // Predicated region
        $region25: #{tpu_custom_call.1} parent=11 // pred_check
          %p233 = pneg %p148
        $region26: #{tpu_custom_call.1} parent=11 // pred_check_branch
          %235 = sbr.rel (%p233) target = $region28
        $region27: #{tpu_custom_call.1} parent=11 // pred_region
          _
        $region28: #{tpu_custom_call.1} parent=11 // pred_fallthru
          _
        // Predicated region
        $region29: #{tpu_custom_call.1} parent=11 // pred_check
          %p236 = pneg %p169
        $region30: #{tpu_custom_call.1} parent=11 // pred_check_branch
          %238 = sbr.rel (%p236) target = $region32
        $region31: #{tpu_custom_call.1} parent=11 // pred_region
          _
        $region32: #{tpu_custom_call.1} parent=11 // pred_fallthru
          _
      $region12: #{tpu_custom_call.1} parent=5 // pred_fallthru
        _
      %p239 = scmp.lt.s32.totalorder %s19, 2
      // Predicated region
      $region33: #{tpu_custom_call.1} parent=5 // pred_check
        %p240 = pneg %p239
      $region34: #{tpu_custom_call.1} parent=5 // pred_check_branch
        %242 = sbr.rel (%p240) target = $region36
      $region35: #{tpu_custom_call.1} parent=5 // pred_region
        // Predicated region
        $region37: #{tpu_custom_call.1} parent=35 // pred_check
          %p243 = pneg %p53
        $region38: #{tpu_custom_call.1} parent=35 // pred_check_branch
          %245 = sbr.rel (%p243) target = $region40
        $region39: #{tpu_custom_call.1} parent=35 // pred_region
          %s246 = sand.u32 %s43, 1
          %s247 = scalar_lea.sflag [#allocation4], %s246
          %s248 = sand.u32 %s43, 1
          %s249 = smul.addr %s248, 8
          %s250 = scalar_lea.vmem [#allocation3], %s249
          %s252 = ssub.s32 128, 128
          %253 = vsyncadd %s247, %s252
          %s254 = smul.addr %s27, 2
          %s255 = smul.addr %s26, 2
          %s256 = sadd.s32 %s254, %s255
          %s257 = smul.addr %s256, 128
          %s258 = scalar_lea.hbm %s0, %s257
          %s260 = sshll.u32 %s250, 4
          %s261 = int_to_ptr.vmem [resolvable:$true] %s260
          %263 = dma.hbm_to_vmem [thread:$0]  %s258, 128, %s261, %s247
        $region40: #{tpu_custom_call.1} parent=35 // pred_fallthru
          _
      $region36: #{tpu_custom_call.1} parent=5 // pred_fallthru
        _
      %p264 = scmp.le.s32.totalorder 1, %s19
      %p265 = scmp.lt.s32.totalorder %s19, 3
      %p266 = pnand %p264, %p265
      %p267 = pneg %p266
      // Predicated region
      $region41: #{tpu_custom_call.1} parent=5 // pred_check
        _
      $region42: #{tpu_custom_call.1} parent=5 // pred_check_branch
        %269 = sbr.rel (%p266) target = $region44
      $region43: #{tpu_custom_call.1} parent=5 // pred_region
        %s270 = ssub.s32 %s19, 1
        %s271 = sand.u32 %s46, 1
        %s272 = scalar_lea.sflag [#allocation4], %s271
        %s273 = sand.u32 %s46, 1
        %s274 = smul.addr %s273, 8
        %s275 = scalar_lea.vmem [#allocation3], %s274
        // Predicated region
        $region45: #{tpu_custom_call.1} parent=43 // pred_check
          %p276 = pneg %p59
        $region46: #{tpu_custom_call.1} parent=43 // pred_check_branch
          %278 = sbr.rel (%p276) target = $region48
        $region47: #{tpu_custom_call.1} parent=43 // pred_region
          %279 = dma.done %s272, 128
        $region48: #{tpu_custom_call.1} parent=43 // pred_fallthru
          _
        // Predicated region
        $region49: #{tpu_custom_call.1} parent=43 // pred_check
          %p280 = pneg %p85
        $region50: #{tpu_custom_call.1} parent=43 // pred_check_branch
          %282 = sbr.rel (%p280) target = $region52
        $region51: #{tpu_custom_call.1} parent=43 // pred_region
          %283 = dma.done [#allocation7], 128
        $region52: #{tpu_custom_call.1} parent=43 // pred_fallthru
          _
        %s284 = sand.u32 %s46, 1
        %s285 = scalar_lea.sflag [#allocation4], %s284
        %s286 = sand.u32 %s46, 1
        %s287 = smul.addr %s286, 8
        %s288 = scalar_lea.vmem [#allocation3], %s287
        %p289 = pneg %p59
        %p290 = pneg %p56
        %p291 = pneg %p85
        %p292 = pneg %p82
        %p293 = pneg %p106
        %p294 = pneg %p103
        %p295 = pneg %p127
        %p296 = pneg %p124
        %p297 = pneg %p148
        %p298 = pneg %p145
        %p299 = pneg %p169
        %p300 = pneg %p166
        %p301 = pneg %p197
        %p302 = pneg %p194
        %s303 = sand.u32 %s184, 1
        %s304 = scalar_lea.sflag [#allocation5], %s303
        %s305 = sand.u32 %s184, 1
        %s306 = smul.addr %s305, 8
        %s307 = scalar_lea.vmem [#allocation8], %s306
        %p309 = scmp.eq.s32.totalorder %s29, 0
        // Predicated region
        $region53: #{tpu_custom_call.1} parent=43 // pred_check
          %p310 = pneg %p309
        $region54: #{tpu_custom_call.1} parent=43 // pred_check_branch
          %312 = sbr.rel (%p310) target = $region56
        $region55: #{tpu_custom_call.1} parent=43 // pred_region
          %v313 = vld [vmem:[%s2] sm:$0x1]
          %v314 = vld [vmem:[%s3] sm:$0x1]
          %v315 = vld [vmem:[#allocation6] sm:$0xff]
          %316 = vadd.xlane.f32.xlu0 %v315
          %v317 = vpop.xlane.xlu0 %316
          %v318 = vrcp.pop 128.0
          %v319 = vmul.f32 %v317, %v318
          %v320 = vsub.f32 %v315, %v319
          %v321 = vmul.f32 %v320, %v320
          %322 = vadd.xlane.f32.xlu0 %v321
          %v323 = vpop.xlane.xlu0 %322
          %v324 = vmul.f32 %v323, %v318
          %v325 = vadd.f32 %v324, 1e-05
          %v326 = vrsqrt.pop %v325
          %v328 = vlaneseq
          %v329 = vshrl.u32 %v328, 7
          %v330 = vsub.s32 0, %v329
          %v331 = vrot.slane %v313, %v330
          %v333 = vmul.f32 %v326, %v331
          %v334 = vmul.f32 %v320, %v333
          %v336 = vlaneseq
          %v337 = vshrl.u32 %v336, 7
          %v338 = vsub.s32 0, %v337
          %v339 = vrot.slane %v314, %v338
          %v341 = vadd.f32 %v334, %v339
          %v342 = vpack.c.bf16 %v341, %v341
          %343 = vst [vmem:[#allocation2] sm:$0xf] %v342
        $region56: #{tpu_custom_call.1} parent=43 // pred_fallthru
          _
        %s344 = smul.u32 %s29, 8
        %s345 = sshra.s32 %s344, 3
        %s346 = sand.u32 %s344, 7
        %s347 = smul.addr %s345, 4
        %s348 = scalar_lea.vmem %s4, %s347
        %v349 = vld [vmem:[%s348] sm:$0xf]
        %v350 = vld [vmem:[#allocation2] sm:$0xf]
        %s351 = scalar_lea.vmem %s5, %s344
        %v352 = vld [vmem:[%s351] sm:$0xff]
        %354 = vset.pattern.permute.xlu0 0
        %355 = vperm.xlu0 %354, %v352
        %v356 = vpop.permute.xlu0 %355
        %vm358 = vcmask 64512
        %v360 = vsel %vm358, %v349, 0
        %vm362 = vcmask 1043456
        %v364 = vsel %vm362, %v350, 0
        %366 = vmatprep.subr.bf16.mxu0 0
        %367 = vmatpush1.bf16.msra.mxu0 %v364
        %368 = vmatprep.subr.bf16.mxu0 0
        %369 = vmatpush1.bf16.msra.mxu0 0
        %370 = vmatprep.subr.bf16.mxu0 0
        %371 = vmatpush1.bf16.msra.mxu0 0
        %372 = vmatprep.subr.bf16.mxu0 0
        %373 = vmatpush1.bf16.msra.mxu0 0
        %374 = vmatprep.subr.bf16.mxu0 0
        %375 = vmatpush1.bf16.msra.mxu0 0
        %376 = vmatprep.subr.bf16.mxu0 0
        %377 = vmatpush1.bf16.msra.mxu0 0
        %378 = vmatprep.subr.bf16.mxu0 0
        %379 = vmatpush1.bf16.msra.mxu0 0
        %380 = vmatprep.subr.bf16.mxu0 0
        %381 = vmatpush1.bf16.msra.mxu0 0
        %382 = vmatprep.subr.bf16.mxu0 0
        %383 = vmatpush1.bf16.msra.mxu0 0
        %384 = vmatprep.subr.bf16.mxu0 0
        %385 = vmatpush1.bf16.msra.mxu0 0
        %386 = vmatprep.subr.bf16.mxu0 0
        %387 = vmatpush1.bf16.msra.mxu0 0
        %388 = vmatprep.subr.bf16.mxu0 0
        %389 = vmatpush1.bf16.msra.mxu0 0
        %390 = vmatprep.subr.bf16.mxu0 0
        %391 = vmatpush1.bf16.msra.mxu0 0
        %392 = vmatprep.subr.bf16.mxu0 0
        %393 = vmatpush1.bf16.msra.mxu0 0
        %394 = vmatprep.subr.bf16.mxu0 0
        %395 = vmatpush1.bf16.msra.mxu0 0
        %396 = vmatprep.subr.bf16.mxu0 0
        %397 = vmatpush1.bf16.msra.mxu0 0
        %398 = vmatprep.mubr.bf16.mxu0 0
        %399 = vmatmul.mubr.bf16.gmra.mrb[0].mxu0 %v360
        %v400 = vpop.f32.mrb[0].mxu0
        %v401 = vadd.f32 %v356, %v400
        %v402 = vpop.f32.mrb[0].mxu0
        %v403 = vpop.f32.mrb[0].mxu0
        %v404 = vpop.f32.mrb[0].mxu0
        %405 = vdwg.mxu0
        %v406 = vld [vmem:[%s275] sm:$0xff]
        %v407 = vmul.f32 %v406, %v401
        %408 = vst [vmem:[%s307] sm:$0xff] %v407
        %s409 = sand.u32 %s184, 1
        %s410 = scalar_lea.sflag [#allocation5], %s409
        %s411 = sand.u32 %s184, 1
        %s412 = smul.addr %s411, 8
        %s413 = scalar_lea.vmem [#allocation8], %s412
        // Predicated region
        $region57: #{tpu_custom_call.1} parent=43 // pred_check
          %p414 = pneg %p194
        $region58: #{tpu_custom_call.1} parent=43 // pred_check_branch
          %416 = sbr.rel (%p414) target = $region60
        $region59: #{tpu_custom_call.1} parent=43 // pred_region
          %s418 = ssub.s32 128, 128
          %419 = vsyncadd %s410, %s418
          %s420 = sadd.s32 %s29, %s28
          %s421 = smul.addr %s420, 128
          %s422 = scalar_lea.hbm %s6, %s421
          %s424 = sshll.u32 %s413, 4
          %s425 = int_to_ptr.vmem [resolvable:$true] %s424
          %427 = dma.vmem_to_hbm [thread:$0]  %s425, 128, %s422, %s410
        $region60: #{tpu_custom_call.1} parent=43 // pred_fallthru
          _
      $region44: #{tpu_custom_call.1} parent=5 // pred_fallthru
        _
      %p428 = scmp.le.s32.totalorder 2, %s19
      // Predicated region
      $region61: #{tpu_custom_call.1} parent=5 // pred_check
        %p429 = pneg %p428
      $region62: #{tpu_custom_call.1} parent=5 // pred_check_branch
        %431 = sbr.rel (%p429) target = $region64
      $region63: #{tpu_custom_call.1} parent=5 // pred_region
        %s432 = ssub.s32 %s19, 2
        // Predicated region
        $region65: #{tpu_custom_call.1} parent=63 // pred_check
          %p433 = pneg %p200
        $region66: #{tpu_custom_call.1} parent=63 // pred_check_branch
          %435 = sbr.rel (%p433) target = $region68
        $region67: #{tpu_custom_call.1} parent=63 // pred_region
          %s436 = sand.u32 %s185, 1
          %s437 = scalar_lea.sflag [#allocation5], %s436
          %s438 = sand.u32 %s185, 1
          %s439 = smul.addr %s438, 8
          %s440 = scalar_lea.vmem [#allocation8], %s439
          %441 = dma.done %s437, 128
        $region68: #{tpu_custom_call.1} parent=63 // pred_fallthru
          _
      $region64: #{tpu_custom_call.1} parent=5 // pred_fallthru
        _
    $region6: #{tpu_custom_call.1} parent=1 // loop_footer
      %s23 = sadd.s32 1, %s19
    $region7: #{tpu_custom_call.1} parent=1 // loop_footer_branch
      %18 = sbr.rel target = $region3
    $region8: #{tpu_custom_call.1} parent=1 // loop_exit
      _
    %442 = vsyncpa [#allocation4], 1
    %s443 = scalar_lea.sflag [#allocation4], 1
    %444 = vsyncpa %s443, 1
    %445 = vsyncpa [#allocation7], 1
    %446 = vsyncpa [#allocation5], 1
    %s447 = scalar_lea.sflag [#allocation5], 1
    %448 = vsyncpa %s447, 1

</llo_original>
